<compile_context>
chip_gen: v6e
topology: v6e:2x2x1
jax: 0.10.0
libtpu: 0.0.40
codegen_flags: <defaults>
</compile_context>

<pallas_src>
import functools

import jax
import jax.numpy as jnp
from jax.experimental import pallas as pl
from jax.experimental.pallas import tpu as pltpu


def _round_up(x, m):
    return (x + m - 1) // m * m


def _vmem_budgets():
    """Generation-aware (tile budget, scoped vmem limit) in bytes."""
    cap = None
    try:
        cap = getattr(pltpu.get_tpu_info(), "vmem_capacity_bytes", None)
    except Exception:  # pragma: no cover - conservative fallback
        cap = None
    if cap is None:
        cap = 64 * 1024 * 1024  # assume smallest per-core VMEM (v7x: 64 MiB/TC)
    if cap >= 100 * 1024 * 1024:  # v5e / v6e: 128 MiB physical VMEM
        return 96 * 1024 * 1024, 110 * 1024 * 1024
    return 40 * 1024 * 1024, 48 * 1024 * 1024  # v7x: 64 MiB per TensorCore


def _linear_kernel_single_k(x_ref, w_ref, b_ref, o_ref, *, compute_dtype):
    # Single K step: W block is VMEM-resident, no accumulator scratch needed.
    x = x_ref[...].astype(compute_dtype)          # in-kernel cast (VPU), x read once
    acc = jnp.dot(x, w_ref[...], preferred_element_type=jnp.float32)
    o_ref[...] = (acc + b_ref[...]).astype(o_ref.dtype)   # bias added once, f32


def _linear_kernel_k_tiled(x_ref, w_ref, b_ref, o_ref, acc_ref, *, compute_dtype):
    k = pl.program_id(2)

    @pl.when(k == 0)
    def _init():
        acc_ref[...] = jnp.zeros_like(acc_ref)

    x = x_ref[...].astype(compute_dtype)
    acc_ref[...] += jnp.dot(x, w_ref[...], preferred_element_type=jnp.float32)

    @pl.when(k == pl.num_programs(2) - 1)
    def _epilogue():
        o_ref[...] = (acc_ref[...] + b_ref[...]).astype(o_ref.dtype)


def pallas_linear(x_flat, w, b, *, compute_dtype=jnp.bfloat16,
                  max_resident_w_bytes=12 * 1024 * 1024):
    """x_flat: [M, K], w: [K, N] (in, out), b: [N] -> [M, N]."""
    M, K = x_flat.shape
    Kw, N = w.shape
    assert Kw == K, "weight in_features mismatch"
    out_dtype = x_flat.dtype

    if compute_dtype is None:
        compute_dtype = x_flat.dtype
    compute_dtype = jnp.dtype(compute_dtype)

    x_bytes = jnp.dtype(x_flat.dtype).itemsize   # x VMEM block keeps its HBM dtype
    w_bytes = compute_dtype.itemsize
    out_bytes = jnp.dtype(out_dtype).itemsize

    vmem_budget, vmem_limit = _vmem_budgets()

    # ---------------- tile selection ----------------
    N_pad = _round_up(N, 128)                     # lane-dense output stores
    TN = N_pad if N_pad <= 2048 else 512          # tile N only for large out_features

    # Single K step whenever the (K, TN) weight block is comfortably VMEM
    # resident: no K padding, no accumulator loop, no W re-fetch per k step.
    single_k = K * TN * w_bytes <= max_resident_w_bytes
    if single_k:
        TK, K_pad = K, K
    else:
        TK, K_pad = None, None
        for tk in (512, 384, 256, 128):           # minimize K-padding waste
            kp = _round_up(K, tk)
            if K_pad is None or kp < K_pad:
                TK, K_pad = tk, kp

    TM = min(512, _round_up(M, 8))
    if M >= 16:
        # Keep >= 2 row tiles so the "parallel" M axis can shard across both
        # TensorCores on v7x; one extra grid step is negligible on 1-TC chips.
        TM = min(TM, _round_up(pl.cdiv(M, 2), 8))

    def _fits(tm, tn):
        x_blk = tm * TK * x_bytes
        w_blk = TK * tn * w_bytes
        b_blk = 8 * tn * 4
        o_blk = tm * tn * out_bytes
        acc = 0 if single_k else tm * tn * 4
        return 2 * (x_blk + w_blk + b_blk + o_blk) + acc <= vmem_budget

    while not _fits(TM, TN):
        if TN > 256:                               # shrink N tile before TM
            TN = max(256, _round_up(TN // 2, 128))
        elif TM > 8:
            TM = max(8, (TM // 2) // 8 * 8)
        else:
            break
    N_pad = _round_up(N, TN)                       # N tiles divide evenly

    # ---------------- operand prep ----------------
    # No M padding: Pallas masks the partial edge block.
    w_c = w.astype(compute_dtype) if w.dtype != compute_dtype else w
    if (K_pad != K) or (N_pad != N):
        w_c = jnp.pad(w_c, ((0, K_pad - K), (0, N_pad - N)))
    x_p = x_flat
    if K_pad != K:
        # zero-fill contraction padding so it contributes nothing to the sum
        x_p = jnp.pad(x_p, ((0, 0), (0, K_pad - K)))
    b_p = b.astype(jnp.float32)
    if N_pad != N:
        b_p = jnp.pad(b_p, (0, N_pad - N))
    b_p = b_p.reshape(1, N_pad)

    nm = pl.cdiv(M, TM)
    nn = N_pad // TN
    nk = K_pad // TK

    # Advisory cost estimate (W is re-fetched whenever its block index changes).
    w_fetches = 1 if (nn == 1 and nk == 1) else nm * nn * nk
    cost = pl.CostEstimate(
        flops=int(2 * M * K_pad * N_pad),
        transcendentals=0,
        bytes_accessed=int(nn * M * K_pad * x_bytes
                           + w_fetches * TK * TN * w_bytes
                           + M * N_pad * out_bytes
                           + N_pad * 4),
    )

    compiler_params = pltpu.CompilerParams(
        dimension_semantics=(("parallel", "parallel") if single_k
                             else ("parallel", "parallel", "arbitrary")),
        vmem_limit_bytes=vmem_limit,
    )

    if single_k:
        y_pad = pl.pallas_call(
            functools.partial(_linear_kernel_single_k, compute_dtype=compute_dtype),
            out_shape=jax.ShapeDtypeStruct((M, N_pad), out_dtype),
            grid=(nm, nn),
            in_specs=[
                pl.BlockSpec((TM, K_pad), lambda i, j: (i, 0)),   # x row tile, full K
                pl.BlockSpec((K_pad, TN), lambda i, j: (0, j)),   # W: VMEM resident (nn==1)
                pl.BlockSpec((1, TN), lambda i, j: (0, j)),       # bias (f32)
            ],
            out_specs=pl.BlockSpec((TM, TN), lambda i, j: (i, j)),
            compiler_params=compiler_params,
            cost_estimate=cost,
        )(x_p, w_c, b_p)
    else:
        y_pad = pl.pallas_call(
            functools.partial(_linear_kernel_k_tiled, compute_dtype=compute_dtype),
            out_shape=jax.ShapeDtypeStruct((M, N_pad), out_dtype),
            grid=(nm, nn, nk),
            in_specs=[
                pl.BlockSpec((TM, TK), lambda i, j, k: (i, k)),
                pl.BlockSpec((TK, TN), lambda i, j, k: (k, j)),
                pl.BlockSpec((1, TN), lambda i, j, k: (0, j)),
            ],
            out_specs=pl.BlockSpec((TM, TN), lambda i, j, k: (i, j)),
            scratch_shapes=[pltpu.VMEM((TM, TN), jnp.float32)],
            compiler_params=compiler_params,
            cost_estimate=cost,
        )(x_p, w_c, b_p)

    if N_pad != N:
        y_pad = y_pad[:, :N]
    return y_pad


def time_distributed_linear(x, w, b, batch_first=False, *,
                            compute_dtype=jnp.bfloat16,
                            max_resident_w_bytes=12 * 1024 * 1024):
    """JAX/Pallas equivalent of TimeDistributed(nn.Linear)(x).

    w: [K, N] = (in_features, out_features) (transposed PyTorch weight), b: [N].
    """
    N = w.shape[1]
    if x.ndim <= 2:
        y = pallas_linear(x.reshape(-1, x.shape[-1]), w, b,
                          compute_dtype=compute_dtype,
                          max_resident_w_bytes=max_resident_w_bytes)
        return y.reshape(x.shape[:-1] + (N,))

    x_reshape = x.reshape(-1, x.shape[-1])                        # (T*B, F_in)
    y = pallas_linear(x_reshape, w, b, compute_dtype=compute_dtype,
                      max_resident_w_bytes=max_resident_w_bytes)  # (T*B, F_out)
    if batch_first:
        y = y.reshape(x.shape[0], -1, y.shape[-1])                # (B, T, F_out)
    else:
        y = y.reshape(-1, x.shape[1], y.shape[-1])                # (T, B, F_out)
    return y


if __name__ == "__main__":
    # Shapes consistent with the forward: (T, B, F_in), batch_first=False,
    # inner module = Linear(32 -> 64).
    T, B, F_IN, F_OUT = 8, 4, 32, 64

    key = jax.random.PRNGKey(0)
    kx, kw, kb = jax.random.split(key, 3)

    x = jax.random.normal(kx, (T, B, F_IN), dtype=jnp.float32)
    # PyTorch Linear weight is (out, in); stored here transposed as (in, out).
    w = (jax.random.uniform(kw, (F_IN, F_OUT), dtype=jnp.float32) - 0.5) * 0.2
    b = (jax.random.uniform(kb, (F_OUT,), dtype=jnp.float32) - 0.5) * 0.2

    y_ref = (x.reshape(-1, F_IN) @ w + b).reshape(T, B, F_OUT)

    # Default path: bf16 MXU inputs (in-kernel x cast), f32 accumulate.
    y = jax.block_until_ready(time_distributed_linear(x, w, b, batch_first=False))
    assert y.shape == (T, B, F_OUT)
    assert jnp.allclose(y, y_ref, atol=2e-2, rtol=2e-2)

    # f32 compute override: tight tolerance.
    y32 = jax.block_until_ready(
        time_distributed_linear(x, w, b, batch_first=False,
                                compute_dtype=jnp.float32))
    assert y32.shape == (T, B, F_OUT)
    assert jnp.allclose(y32, y_ref, atol=1e-5, rtol=1e-5)

    # batch_first=True reshape semantics.
    xb = jnp.transpose(x, (1, 0, 2))                               # (B, T, F_in)
    yb = jax.block_until_ready(
        time_distributed_linear(xb, w, b, batch_first=True,
                                compute_dtype=jnp.float32))
    assert yb.shape == (B, T, F_OUT)
    assert jnp.allclose(yb, jnp.transpose(y_ref, (1, 0, 2)), atol=1e-5, rtol=1e-5)

    # Odd leading dims: exercises the no-M-padding / masked edge-block path.
    To, Bo = 5, 3
    xo = jax.random.normal(kx, (To, Bo, F_IN), dtype=jnp.float32)
    yo = jax.block_until_ready(
        time_distributed_linear(xo, w, b, batch_first=False,
                                compute_dtype=jnp.float32))
    yo_ref = (xo.reshape(-1, F_IN) @ w + b).reshape(To, Bo, F_OUT)
    assert yo.shape == (To, Bo, F_OUT)
    assert jnp.allclose(yo, yo_ref, atol=1e-5, rtol=1e-5)

    # Force the K-tiled accumulator path on a small shape (max_resident_w_bytes=0).
    K2 = 1024
    x2 = jax.random.normal(kx, (T, B, K2), dtype=jnp.float32)
    w2 = (jax.random.uniform(kw, (K2, F_OUT), dtype=jnp.float32) - 0.5) * 0.05
    y2 = jax.block_until_ready(
        time_distributed_linear(x2, w2, b, batch_first=False,
                                max_resident_w_bytes=0))
    y2_ref = (x2.reshape(-1, K2) @ w2 + b).reshape(T, B, F_OUT)
    assert y2.shape == (T, B, F_OUT)
    assert jnp.allclose(y2, y2_ref, atol=2e-2, rtol=2e-2)

    print("KERNEL_OK")
</pallas_src>

<mosaic_0001>
module attributes {stable_mosaic.version = 11 : i64} {
  func.func @_linear_kernel_single_k(%arg0: i32, %arg1: i32, %arg2: memref<16x32xf32, #tpu.memory_space<vmem>>, %arg3: memref<32x128xbf16, #tpu.memory_space<vmem>>, %arg4: memref<1x128xf32, #tpu.memory_space<vmem>>, %arg5: memref<16x128xf32, #tpu.memory_space<vmem>>) attributes {dimension_semantics = [#tpu.dimension_semantics<parallel>, #tpu.dimension_semantics<parallel>], iteration_bounds = array<i64: 2, 1>, scalar_prefetch = 0 : i64, scratch_operands = 0 : i64, tpu.core_type = #tpu.core_type<tc>, window_params = [{transform_indices = @transform_0, window_bounds = array<i64: 16, 32>}, {transform_indices = @transform_1, window_bounds = array<i64: 32, 128>}, {transform_indices = @transform_2, window_bounds = array<i64: 1, 128>}, {transform_indices = @transform_3, window_bounds = array<i64: 16, 128>}]} {
    %c0 = arith.constant 0 : index
    %c0_0 = arith.constant 0 : index
    %0 = vector.load %arg2[%c0, %c0_0] : memref<16x32xf32, #tpu.memory_space<vmem>>, vector<16x32xf32>
    %1 = arith.truncf %0 : vector<16x32xf32> to vector<16x32xbf16>
    %c0_1 = arith.constant 0 : index
    %c0_2 = arith.constant 0 : index
    %2 = vector.load %arg3[%c0_1, %c0_2] : memref<32x128xbf16, #tpu.memory_space<vmem>>, vector<32x128xbf16>
    %cst = arith.constant dense<0.000000e+00> : vector<16x128xf32>
    %3 = tpu.matmul %1, %2, %cst {dimension_numbers = #tpu.dot_dimension_numbers<[1], [0], [0], [1], [0, 0, 1, 1], [], []>} : vector<16x32xbf16>, vector<32x128xbf16>, vector<16x128xf32> -> vector<16x128xf32>
    %c0_3 = arith.constant 0 : index
    %c0_4 = arith.constant 0 : index
    %4 = vector.load %arg4[%c0_3, %c0_4] : memref<1x128xf32, #tpu.memory_space<vmem>>, vector<1x128xf32>
    %5 = vector.broadcast %4 : vector<1x128xf32> to vector<16x128xf32>
    %6 = arith.addf %3, %5 : vector<16x128xf32>
    %c0_5 = arith.constant 0 : index
    %c0_6 = arith.constant 0 : index
    %7 = vector.load %arg5[%c0_5, %c0_6] : memref<16x128xf32, #tpu.memory_space<vmem>>, vector<16x128xf32>
    tpu.vector_store %arg5[%c0_5, %c0_6], %6 {strides = array<i32>} : memref<16x128xf32, #tpu.memory_space<vmem>>, vector<16x128xf32>,
    return
  }
  func.func @transform_0(%arg0: i32, %arg1: i32) -> (i32, i32) {
    %c0_i32 = arith.constant 0 : i32
    %c0_i32_0 = arith.constant 0 : i32
    return %arg0, %c0_i32 : i32, i32
  }
  func.func @transform_1(%arg0: i32, %arg1: i32) -> (i32, i32) {
    %c0_i32 = arith.constant 0 : i32
    %c0_i32_0 = arith.constant 0 : i32
    return %c0_i32, %arg1 : i32, i32
  }
  func.func @transform_2(%arg0: i32, %arg1: i32) -> (i32, i32) {
    %c0_i32 = arith.constant 0 : i32
    %c0_i32_0 = arith.constant 0 : i32
    return %c0_i32, %arg1 : i32, i32
  }
  func.func @transform_3(%arg0: i32, %arg1: i32) -> (i32, i32) {
    %c0_i32 = arith.constant 0 : i32
    return %arg0, %arg1 : i32, i32
  }
}

</mosaic_0001>

<llo_original>
// kernel: tpu_custom_call.1
$region0: #{tpu_custom_call.1}
  #allocation0 [shape = 'u32[]', space=smem, size = 0x4, offset = 0x4, fixed_abs, tag = 'smem constant byte address 0x4 - core index']
  #allocation1 [shape = 'u32[144,128]{1,0:T(1,128)}', space=vmem, size = 0x12000, scoped, tag = 'internal scratch']
  %s0 = inlined_call_operand.hbm [shape: f32[32,32], index: 0, kind: input, shape index: {}]
  %s1 = inlined_call_operand.hbm [shape: bf16[32,128], index: 1, kind: input, shape index: {}]
  %s2 = inlined_call_operand.vmem [shape: f32[1,128], index: 2, kind: input, shape index: {}]
  %s3 = inlined_call_operand.hbm [shape: f32[32,128], index: 3, kind: output, shape index: {}]
  %s4 = sld [smem:[#allocation0]]
  $region53: #{tpu_custom_call.1} parent=0
    _
  %s6 = ssub.s32 1, %s4
  %s7 = scalar_select 0, %s6, %s4
  $region1: #{tpu_custom_call.1} parent=0
    #allocation2 [shape = 'u8[16384]{0}', space=vmem, size = 0x4000, scoped, tag = 'input window, operand 0']
    #allocation3 [shape = 's32[2]{0}', space=sflag, size = 0x8, scoped, tag = 'scoped memory for tpu_custom_call.1']
    #allocation4 [shape = 's32[2]{0}', space=sflag, size = 0x8, scoped, tag = 'scoped memory for tpu_custom_call.1']
    #allocation5 [shape = 'u8[8192]{0}', space=vmem, size = 0x2000, scoped, tag = 'input window, operand 1, single buffered']
    #allocation6 [shape = 's32[1]{0}', space=sflag, size = 0x4, scoped, tag = 'scoped memory for tpu_custom_call.1']
    #allocation7 [shape = 'u8[16384]{0}', space=vmem, size = 0x4000, scoped, tag = 'output window, operand 0']
    %8 = vsyncpa [#allocation3], 0
    %s9 = scalar_lea.sflag [#allocation3], 1
    %10 = vsyncpa %s9, 0
    %11 = vsyncpa [#allocation6], 0
    %12 = vsyncpa [#allocation4], 0
    %s13 = scalar_lea.sflag [#allocation4], 1
    %14 = vsyncpa %s13, 0
    loop: start=0, step=1, limit=4
    $region2: #{tpu_custom_call.1} parent=1 // loop_pre_header
      _
    $region3: #{tpu_custom_call.1} parent=1 // loop_header
      %s16 = sphi 0, %s20
      %p17 = scmp.ge.s32.totalorder %s16, 4
      %s23 = sphi 0, %s35
      %s24 = sphi 0, %s31
      %s25 = sphi 0, %s23
      %s26 = sphi 0, %s24
      %s27 = sphi 0, %s25
      %s28 = sphi 0, %s26
      %s38 = sphi 0, %s40
      %s41 = sphi 0, %s38
      %s42 = sphi 0, %s41
      %s58 = sphi 0, %s42
      %s64 = sphi 0, %s66
      %s67 = sphi 0, %s64
      %s68 = sphi 0, %s67
      %s84 = sphi 0, %s68
      %s90 = sphi 0, %s92
      %s93 = sphi 0, %s90
      %s94 = sphi 0, %s93
      %s110 = sphi 0, %s94
      %s118 = sphi 0, %s120
      %s121 = sphi 0, %s118
      %s122 = sphi 0, %s121
      %s138 = sphi 0, %s122
    $region4: #{tpu_custom_call.1} parent=1 // loop_header_branch
      %19 = sbr.rel (%p17) target = $region8
    $region5: #{tpu_custom_call.1} parent=1 // loop_body
      %s21 = ssub.s32 %s16, 1
      %s22 = ssub.s32 %s16, 2
      %s29 = sadd.s32 1, %s24
      %p30 = scmp.ge.s32.totalorder %s29, 1
      %s31 = scalar_select %p30, 0, %s29
      %s32 = sadd.s32 1, %s23
      %s33 = scalar_select %p30, %s32, %s23
      %p34 = scmp.ge.s32.totalorder %s33, 2
      %s35 = scalar_select %p34, 0, %s33
      %s36 = ssub.s32 %s23, %s35
      %p37 = scmp.eq.s32.totalorder %s36, 0
      %s39 = sadd.s32 %s38, 1
      %s40 = scalar_select %p37, %s38, %s39
      %p43 = pneg %p37
      %p44 = scmp.eq.s32.totalorder %s16, 1
      %p45 = por %p43, %p44
      %p46 = scmp.ne.s32.totalorder %s38, %s41
      %p47 = scmp.eq.s32.totalorder %s16, 0
      %p48 = por %p46, %p47
      %p49 = scmp.ne.s32.totalorder %s38, %s41
      %p50 = scmp.eq.s32.totalorder %s21, 1
      %p51 = por %p49, %p50
      %p52 = scmp.ne.s32.totalorder %s41, %s42
      %p53 = scmp.eq.s32.totalorder %s21, 0
      %p54 = por %p52, %p53
      %p55 = scmp.ne.s32.totalorder %s41, %s42
      %p56 = scmp.eq.s32.totalorder %s22, 1
      %p57 = por %p55, %p56
      %p59 = scmp.ne.s32.totalorder %s42, %s58
      %p60 = scmp.eq.s32.totalorder %s22, 0
      %p61 = por %p59, %p60
      %s62 = ssub.s32 %s24, %s31
      %p63 = scmp.eq.s32.totalorder %s62, 0
      %s65 = sadd.s32 %s64, 1
      %s66 = scalar_select %p63, %s64, %s65
      %p69 = pneg %p63
      %p70 = scmp.eq.s32.totalorder %s16, 1
      %p71 = por %p69, %p70
      %p72 = scmp.ne.s32.totalorder %s64, %s67
      %p73 = scmp.eq.s32.totalorder %s16, 0
      %p74 = por %p72, %p73
      %p75 = scmp.ne.s32.totalorder %s64, %s67
      %p76 = scmp.eq.s32.totalorder %s21, 1
      %p77 = por %p75, %p76
      %p78 = scmp.ne.s32.totalorder %s67, %s68
      %p79 = scmp.eq.s32.totalorder %s21, 0
      %p80 = por %p78, %p79
      %p81 = scmp.ne.s32.totalorder %s67, %s68
      %p82 = scmp.eq.s32.totalorder %s22, 1
      %p83 = por %p81, %p82
      %p85 = scmp.ne.s32.totalorder %s68, %s84
      %p86 = scmp.eq.s32.totalorder %s22, 0
      %p87 = por %p85, %p86
      %s88 = ssub.s32 %s24, %s31
      %p89 = scmp.eq.s32.totalorder %s88, 0
      %s91 = sadd.s32 %s90, 1
      %s92 = scalar_select %p89, %s90, %s91
      %p95 = pneg %p89
      %p96 = scmp.eq.s32.totalorder %s16, 1
      %p97 = por %p95, %p96
      %p98 = scmp.ne.s32.totalorder %s90, %s93
      %p99 = scmp.eq.s32.totalorder %s16, 0
      %p100 = por %p98, %p99
      %p101 = scmp.ne.s32.totalorder %s90, %s93
      %p102 = scmp.eq.s32.totalorder %s21, 1
      %p103 = por %p101, %p102
      %p104 = scmp.ne.s32.totalorder %s93, %s94
      %p105 = scmp.eq.s32.totalorder %s21, 0
      %p106 = por %p104, %p105
      %p107 = scmp.ne.s32.totalorder %s93, %s94
      %p108 = scmp.eq.s32.totalorder %s22, 1
      %p109 = por %p107, %p108
      %p111 = scmp.ne.s32.totalorder %s94, %s110
      %p112 = scmp.eq.s32.totalorder %s22, 0
      %p113 = por %p111, %p112
      %s114 = ssub.s32 %s23, %s35
      %s115 = ssub.s32 %s24, %s31
      %s116 = sor.u32 %s114, %s115
      %p117 = scmp.eq.s32.totalorder %s116, 0
      %s119 = sadd.s32 %s118, 1
      %s120 = scalar_select %p117, %s118, %s119
      %p123 = pneg %p117
      %p124 = scmp.eq.s32.totalorder %s16, 1
      %p125 = por %p123, %p124
      %p126 = scmp.ne.s32.totalorder %s118, %s121
      %p127 = scmp.eq.s32.totalorder %s16, 0
      %p128 = por %p126, %p127
      %p129 = scmp.ne.s32.totalorder %s118, %s121
      %p130 = scmp.eq.s32.totalorder %s21, 1
      %p131 = por %p129, %p130
      %p132 = scmp.ne.s32.totalorder %s121, %s122
      %p133 = scmp.eq.s32.totalorder %s21, 0
      %p134 = por %p132, %p133
      %p135 = scmp.ne.s32.totalorder %s121, %s122
      %p136 = scmp.eq.s32.totalorder %s22, 1
      %p137 = por %p135, %p136
      %p139 = scmp.ne.s32.totalorder %s122, %s138
      %p140 = scmp.eq.s32.totalorder %s22, 0
      %p141 = por %p139, %p140
      %p142 = scmp.le.s32.totalorder 1, %s16
      %p143 = scmp.lt.s32.totalorder %s16, 3
      %p144 = pnand %p142, %p143
      %p145 = pneg %p144
      // Predicated region
      $region9: #{tpu_custom_call.1} parent=5 // pred_check
        _
      $region10: #{tpu_custom_call.1} parent=5 // pred_check_branch
        %147 = sbr.rel (%p144) target = $region12
      $region11: #{tpu_custom_call.1} parent=5 // pred_region
        %s148 = ssub.s32 %s16, 1
        // Predicated region
        $region13: #{tpu_custom_call.1} parent=11 // pred_check
          %p149 = pneg %p80
        $region14: #{tpu_custom_call.1} parent=11 // pred_check_branch
          %151 = sbr.rel (%p149) target = $region16
        $region15: #{tpu_custom_call.1} parent=11 // pred_region
          %s153 = ssub.s32 256, 256
          %154 = vsyncadd [#allocation6], %s153
          %s155 = smul.addr %s26, 64
          %s156 = scalar_lea.hbm %s1, %s155
          %s157 = sshll.u32 [#allocation5], 4
          %s158 = int_to_ptr.vmem [resolvable:$true] %s157
          %163 = dma.hbm_to_vmem [thread:$0]  %s156, 256, %s158, [#allocation6], 64, 64, 4
        $region16: #{tpu_custom_call.1} parent=11 // pred_fallthru
          _
        // Predicated region
        $region17: #{tpu_custom_call.1} parent=11 // pred_check
          %p164 = pneg %p106
        $region18: #{tpu_custom_call.1} parent=11 // pred_check_branch
          %166 = sbr.rel (%p164) target = $region20
        $region19: #{tpu_custom_call.1} parent=11 // pred_region
          %p167 = scmp.lt.s32.totalorder %s26, 0
          %s168 = scalar_select %p167, %s26, 0
          %s169 = scalar_lea.vmem %s2, %s168
        $region20: #{tpu_custom_call.1} parent=11 // pred_fallthru
          _
      $region12: #{tpu_custom_call.1} parent=5 // pred_fallthru
        _
      %p170 = scmp.lt.s32.totalorder %s16, 2
      // Predicated region
      $region21: #{tpu_custom_call.1} parent=5 // pred_check
        %p171 = pneg %p170
      $region22: #{tpu_custom_call.1} parent=5 // pred_check_branch
        %173 = sbr.rel (%p171) target = $region24
      $region23: #{tpu_custom_call.1} parent=5 // pred_region
        // Predicated region
        $region25: #{tpu_custom_call.1} parent=23 // pred_check
          %p174 = pneg %p48
        $region26: #{tpu_custom_call.1} parent=23 // pred_check_branch
          %176 = sbr.rel (%p174) target = $region28
        $region27: #{tpu_custom_call.1} parent=23 // pred_region
          %s177 = sand.u32 %s38, 1
          %s178 = scalar_lea.sflag [#allocation3], %s177
          %s179 = sand.u32 %s38, 1
          %s180 = smul.addr %s179, 16
          %s181 = scalar_lea.vmem [#allocation2], %s180
          %s182 = smul.u32 2, %s23
          %s184 = ssub.s32 256, 256
          %185 = vsyncadd %s178, %s184
          %s186 = smul.addr %s182, 128
          %s187 = scalar_lea.hbm %s0, %s186
          %s188 = sshll.u32 %s181, 4
          %s189 = int_to_ptr.vmem [resolvable:$true] %s188
          %194 = dma.hbm_to_vmem [thread:$0]  %s187, 256, %s189, %s178, 128, 128, 8
        $region28: #{tpu_custom_call.1} parent=23 // pred_fallthru
          _
      $region24: #{tpu_custom_call.1} parent=5 // pred_fallthru
        _
      %p195 = scmp.le.s32.totalorder 1, %s16
      %p196 = scmp.lt.s32.totalorder %s16, 3
      %p197 = pnand %p195, %p196
      %p198 = pneg %p197
      // Predicated region
      $region29: #{tpu_custom_call.1} parent=5 // pred_check
        _
      $region30: #{tpu_custom_call.1} parent=5 // pred_check_branch
        %200 = sbr.rel (%p197) target = $region32
      $region31: #{tpu_custom_call.1} parent=5 // pred_region
        %s201 = ssub.s32 %s16, 1
        %s202 = sand.u32 %s41, 1
        %s203 = scalar_lea.sflag [#allocation3], %s202
        %s204 = sand.u32 %s41, 1
        %s205 = smul.addr %s204, 16
        %s206 = scalar_lea.vmem [#allocation2], %s205
        // Predicated region
        $region33: #{tpu_custom_call.1} parent=31 // pred_check
          %p207 = pneg %p54
        $region34: #{tpu_custom_call.1} parent=31 // pred_check_branch
          %209 = sbr.rel (%p207) target = $region36
        $region35: #{tpu_custom_call.1} parent=31 // pred_region
          %210 = dma.done %s203, 256
        $region36: #{tpu_custom_call.1} parent=31 // pred_fallthru
          _
        // Predicated region
        $region37: #{tpu_custom_call.1} parent=31 // pred_check
          %p211 = pneg %p80
        $region38: #{tpu_custom_call.1} parent=31 // pred_check_branch
          %213 = sbr.rel (%p211) target = $region40
        $region39: #{tpu_custom_call.1} parent=31 // pred_region
          %214 = dma.done [#allocation6], 256
        $region40: #{tpu_custom_call.1} parent=31 // pred_fallthru
          _
        %s215 = sand.u32 %s41, 1
        %s216 = scalar_lea.sflag [#allocation3], %s215
        %s217 = sand.u32 %s41, 1
        %s218 = smul.addr %s217, 16
        %s219 = scalar_lea.vmem [#allocation2], %s218
        %p220 = pneg %p54
        %p221 = pneg %p51
        %p222 = pneg %p80
        %p223 = pneg %p77
        %p224 = scmp.lt.s32.totalorder %s26, 0
        %s225 = scalar_select %p224, %s26, 0
        %s226 = scalar_lea.vmem %s2, %s225
        %p227 = pneg %p106
        %p228 = pneg %p103
        %p229 = pneg %p134
        %p230 = pneg %p131
        %s231 = sand.u32 %s121, 1
        %s232 = scalar_lea.sflag [#allocation4], %s231
        %s233 = sand.u32 %s121, 1
        %s234 = smul.addr %s233, 16
        %s235 = scalar_lea.vmem [#allocation7], %s234
        %s236 = smul.u32 2, %s25
        %p237 = scmp.lt.s32.totalorder %s26, 0
        %s238 = scalar_select %p237, %s26, 0
        %s239 = scalar_lea.vmem %s2, %s238
        %s240 = smul.u32 2, %s25
        %v242 = vld [vmem:[%s206] sm:$0xff]
        %v243 = vld [vmem:[%s206 + $0x8] sm:$0xff]
        %v244 = vpack.c.bf16 %v243, %v242
        %v245 = vld [vmem:[#allocation5] sm:$0xf]
        %v246 = vld [vmem:[#allocation5 + $0x4] sm:$0xf]
        %v247 = vld [vmem:[#allocation5 + $0x8] sm:$0xf]
        %v248 = vld [vmem:[#allocation5 + $0xc] sm:$0xf]
        %v249 = vld [vmem:[%s239] sm:$0x1]
        %v251 = vlaneseq
        %v252 = vshrl.u32 %v251, 7
        %v253 = vsub.s32 0, %v252
        %v254 = vrot.slane %v249, %v253
        %v260 = vunpack.c.l.b16 %v245
        %v261 = vunpack.c.l.b16 %v246
        %v262 = vunpack.c.l.b16 %v247
        %v263 = vunpack.c.l.b16 %v248
        %v264 = vpack.c.b16 %v261, %v260
        %v265 = vpack.c.b16 %v263, %v262
        %vm268 = vcmask 261120
        %v270 = vsel %vm268, %v244, 0
        %272 = vmatprep.subr.bf16.mxu0 0
        %273 = vmatpush1.bf16.msra.mxu0 0
        %274 = vmatprep.subr.bf16.mxu0 0
        %275 = vmatpush1.bf16.msra.mxu0 0
        %276 = vmatprep.subr.bf16.mxu0 0
        %277 = vmatpush1.bf16.msra.mxu0 0
        %278 = vmatprep.subr.bf16.mxu0 0
        %279 = vmatpush1.bf16.msra.mxu0 0
        %280 = vmatprep.subr.bf16.mxu0 0
        %281 = vmatpush1.bf16.msra.mxu0 0
        %282 = vmatprep.subr.bf16.mxu0 0
        %283 = vmatpush1.bf16.msra.mxu0 0
        %284 = vmatprep.subr.bf16.mxu0 0
        %285 = vmatpush1.bf16.msra.mxu0 %v265
        %286 = vmatprep.subr.bf16.mxu0 0
        %287 = vmatpush1.bf16.msra.mxu0 %v264
        %288 = vmatprep.subr.bf16.mxu0 0
        %289 = vmatpush2.bf16.msra.mxu0 0
        %290 = vmatprep.subr.bf16.mxu0 0
        %291 = vmatpush2.bf16.msra.mxu0 0
        %292 = vmatprep.subr.bf16.mxu0 0
        %293 = vmatpush2.bf16.msra.mxu0 0
        %294 = vmatprep.subr.bf16.mxu0 0
        %295 = vmatpush2.bf16.msra.mxu0 0
        %296 = vmatprep.subr.bf16.mxu0 0
        %297 = vmatpush2.bf16.msra.mxu0 0
        %298 = vmatprep.subr.bf16.mxu0 0
        %299 = vmatpush2.bf16.msra.mxu0 0
        %300 = vmatprep.subr.bf16.mxu0 0
        %301 = vmatpush2.bf16.msra.mxu0 0
        %302 = vmatprep.subr.bf16.mxu0 0
        %303 = vmatpush2.bf16.msra.mxu0 0
        %304 = vmatprep.mubr.bf16.mxu0 0
        %305 = vmatmul.mubr.bf16.gmra.mxu0 %v270
        %v306 = vpop.f32.mrf.mxu0
        %v307 = vadd.f32 %v254, %v306
        %v308 = vpop.f32.mrf.mxu0
        %v309 = vpop.f32.mrf.mxu0
        %v310 = vadd.f32 %v254, %v309
        %v311 = vpop.f32.mrf.mxu0
        %312 = vdwg.mxu0
        %313 = vst [vmem:[%s235] sm:$0xff] %v307
        %314 = vst [vmem:[%s235 + $0x8] sm:$0xff] %v310
        %s315 = sand.u32 %s121, 1
        %s316 = scalar_lea.sflag [#allocation4], %s315
        %s317 = sand.u32 %s121, 1
        %s318 = smul.addr %s317, 16
        %s319 = scalar_lea.vmem [#allocation7], %s318
        // Predicated region
        $region41: #{tpu_custom_call.1} parent=31 // pred_check
          %p320 = pneg %p131
        $region42: #{tpu_custom_call.1} parent=31 // pred_check_branch
          %322 = sbr.rel (%p320) target = $region44
        $region43: #{tpu_custom_call.1} parent=31 // pred_region
          %s323 = smul.u32 2, %s25
          %s325 = ssub.s32 256, 256
          %326 = vsyncadd %s316, %s325
          %s327 = sadd.s32 %s26, %s323
          %s328 = smul.addr %s327, 128
          %s329 = scalar_lea.hbm %s3, %s328
          %s330 = sshll.u32 %s319, 4
          %s331 = int_to_ptr.vmem [resolvable:$true] %s330
          %336 = dma.vmem_to_hbm [thread:$0]  %s331, 256, %s329, %s316, 128, 128, 8
        $region44: #{tpu_custom_call.1} parent=31 // pred_fallthru
          _
      $region32: #{tpu_custom_call.1} parent=5 // pred_fallthru
        _
      %p337 = scmp.le.s32.totalorder 2, %s16
      // Predicated region
      $region45: #{tpu_custom_call.1} parent=5 // pred_check
        %p338 = pneg %p337
      $region46: #{tpu_custom_call.1} parent=5 // pred_check_branch
        %340 = sbr.rel (%p338) target = $region48
      $region47: #{tpu_custom_call.1} parent=5 // pred_region
        %s341 = ssub.s32 %s16, 2
        // Predicated region
        $region49: #{tpu_custom_call.1} parent=47 // pred_check
          %p342 = pneg %p137
        $region50: #{tpu_custom_call.1} parent=47 // pred_check_branch
          %344 = sbr.rel (%p342) target = $region52
        $region51: #{tpu_custom_call.1} parent=47 // pred_region
          %s345 = sand.u32 %s122, 1
          %s346 = scalar_lea.sflag [#allocation4], %s345
          %s347 = sand.u32 %s122, 1
          %s348 = smul.addr %s347, 16
          %s349 = scalar_lea.vmem [#allocation7], %s348
          %350 = dma.done %s346, 256
        $region52: #{tpu_custom_call.1} parent=47 // pred_fallthru
          _
      $region48: #{tpu_custom_call.1} parent=5 // pred_fallthru
        _
    $region6: #{tpu_custom_call.1} parent=1 // loop_footer
      %s20 = sadd.s32 1, %s16
    $region7: #{tpu_custom_call.1} parent=1 // loop_footer_branch
      %15 = sbr.rel target = $region3
    $region8: #{tpu_custom_call.1} parent=1 // loop_exit
      _
    %351 = vsyncpa [#allocation3], 1
    %s352 = scalar_lea.sflag [#allocation3], 1
    %353 = vsyncpa %s352, 1
    %354 = vsyncpa [#allocation6], 1
    %355 = vsyncpa [#allocation4], 1
    %s356 = scalar_lea.sflag [#allocation4], 1
    %357 = vsyncpa %s356, 1

</llo_original>
